<compile_context>
chip_gen: v7x
topology: tpu7x:2x2x1
jax: 0.10.0
libtpu: 0.0.40
codegen_flags: <defaults>
</compile_context>

<pallas_src>
import jax
import jax.numpy as jnp
from jax.experimental import pallas as pl
from jax.experimental.pallas import tpu as pltpu


# ---------------------------------------------------------------------------
# Kernel 1: 2x2 max-pool reduction + interval threshold (pre-noise) + noise add
#   d4_ref : (4, m, n) -- the 4 phases of each 2x2 pooling window
#   outputs: d_noised (m, n), threshold (1, 1)
# ---------------------------------------------------------------------------
def _make_pool_noise_call(m, n):
    inv_min_mn = 1.0 / float(min(m, n))

    def kernel(noise_ref, d4_ref, dn_ref, thr_ref):
        d4 = d4_ref[...]                      # (4, m, n)
        d_pool = jnp.max(d4, axis=0)          # (m, n) == MaxPool2d(kernel=2, stride=2)
        # IntervalThreshold on the pre-noise pooled map (matches the reference ordering).
        thr_ref[...] = (jnp.max(d_pool, keepdims=True)
                        - jnp.min(d_pool, keepdims=True)) * inv_min_mn
        # Noise: torch.rand_like(d_pool) * stdev(1) + mean(0), uniform [0, 1)
        dn_ref[...] = d_pool + noise_ref[...]

    return pl.pallas_call(
        kernel,
        out_shape=(
            jax.ShapeDtypeStruct((m, n), jnp.float32),    # d_noised
            jax.ShapeDtypeStruct((1, 1), jnp.float32),    # threshold
        ),
        in_specs=[
            pl.BlockSpec(memory_space=pltpu.MemorySpace.VMEM),   # noise (m, n)
            pl.BlockSpec(memory_space=pltpu.MemorySpace.VMEM),   # d4 (4, m, n)
        ],
        out_specs=(
            pl.BlockSpec(memory_space=pltpu.MemorySpace.VMEM),
            pl.BlockSpec(memory_space=pltpu.MemorySpace.VMEM),
        ),
    )


# ---------------------------------------------------------------------------
# Kernel 2: row-tiled dense adjacency + dropout + per-tile edge counts.
#   adj[u, v] = (u, v diagonal grid neighbours) & (|dn[u]-dn[v]| <= thr) & keep(u, v)
# ---------------------------------------------------------------------------
def _pick_row_tile(N, max_tile=512):
    if N <= max_tile:
        return N
    for t in range(max_tile, 7, -8):          # largest multiple-of-8 divisor <= max_tile
        if N % t == 0:
            return t
    return N                                   # fallback: single block


def _make_adjacency_call(N, tile_r):
    num_tiles = pl.cdiv(N, tile_r)

    def kernel(thr_ref, dcol_ref, drow_ref, iu_ref, iv_ref, ju_ref, jv_ref,
               drop_ref, adj_ref, cnt_ref):
        thr = thr_ref[0]
        diff = jnp.abs(dcol_ref[...] - drow_ref[...])               # (tile_r, N)
        # Diagonal grid neighbours: |di| == 1 and |dj| == 1 (coords precomputed; no //, %)
        is_diag = ((jnp.abs(iu_ref[...] - iv_ref[...]) == 1)
                   & (jnp.abs(ju_ref[...] - jv_ref[...]) == 1))
        # GraphDropout(p=0.5): reference `if self.train:` is always truthy -> always applied
        keep = drop_ref[...] > 0
        edge = is_diag & (diff <= thr) & keep
        adj_ref[...] = edge.astype(jnp.int8)
        # Per-tile edge count (exact: counts <= 4*tile_r fit in f32), no extra N^2 pass.
        cnt = jnp.sum(edge.astype(jnp.float32), keepdims=True)      # (1, 1)
        cnt_ref[...] = cnt.astype(jnp.int32).reshape(1, 1, 1)

    row_blk = lambda r: (r, 0)
    full_row = lambda r: (0, 0)
    return pl.pallas_call(
        kernel,
        out_shape=(
            jax.ShapeDtypeStruct((N, N), jnp.int8),               # adjacency (0 / 1)
            jax.ShapeDtypeStruct((num_tiles, 1, 1), jnp.int32),   # per-tile edge counts
        ),
        grid=(num_tiles,),
        in_specs=[
            pl.BlockSpec(memory_space=pltpu.MemorySpace.SMEM),    # threshold (1,)
            pl.BlockSpec((tile_r, 1), row_blk),                   # d_noised as column
            pl.BlockSpec((1, N), full_row),                       # d_noised as row
            pl.BlockSpec((tile_r, 1), row_blk),                   # i coord of row nodes
            pl.BlockSpec((1, N), full_row),                       # i coord of col nodes
            pl.BlockSpec((tile_r, 1), row_blk),                   # j coord of row nodes
            pl.BlockSpec((1, N), full_row),                       # j coord of col nodes
            pl.BlockSpec((tile_r, N), row_blk),                   # dropout keep-mask tile
        ],
        out_specs=(
            pl.BlockSpec((tile_r, N), row_blk),
            pl.BlockSpec((1, 1, 1), lambda r: (r, 0, 0)),
        ),
        compiler_params=pltpu.CompilerParams(
            dimension_semantics=("parallel",),        # row tiles are independent (v7x 2 TCs)
            vmem_limit_bytes=32 * 1024 * 1024,
        ),
    )


def extract_graph(d_coarse, R_scale, key):
    """JAX/Pallas port of ExtractGraph.forward(d_coarse, R_scale).

    Returns (edge_index, num_edges, adjacency). edge_index is padded with -1 to the
    static upper bound of 4*N edges (torch returns a dynamic (2, nnz) tensor).
    """
    del R_scale  # Noise ignores R_scale in the reference forward
    C, H, W = d_coarse.shape
    assert C == 1 and H % 2 == 0 and W % 2 == 0
    m, n = H // 2, W // 2
    N = m * n
    print("pooled shape ", (1, m, n))

    k_noise, k_drop = jax.random.split(key)
    # torch.rand_like(d_pool): uniform [0, 1)
    noise = jax.random.uniform(k_noise, (m, n), dtype=jnp.float32)
    # GraphDropout keep mask: independent Bernoulli(0.5) per dense (u, v) element,
    # matching torch.empty_like(adjacency_matrix).bernoulli_(0.5).
    drop_mask = jax.random.bernoulli(k_drop, 0.5, (N, N)).astype(jnp.int8)

    # Layout glue (O(H*W), negligible vs the N^2 kernel): stack the 4 phases of each
    # 2x2 window on a leading axis so the pool is a cheap leading-axis max in-kernel.
    d4 = d_coarse[0].reshape(m, 2, n, 2).transpose(1, 3, 0, 2).reshape(4, m, n)

    d_noised, thr11 = _make_pool_noise_call(m, n)(noise, d4)
    thr = thr11.reshape(1)                      # flat (1,) scalar for SMEM input

    # node u = i*n + j (row-major): noised values + integer grid coordinates as
    # column / row vectors so the adjacency kernel never does per-element // or %.
    d_col = d_noised.reshape(N, 1)
    d_row = d_noised.reshape(1, N)
    ii = jnp.repeat(jnp.arange(m, dtype=jnp.int32), n)    # i coordinate of node u
    jj = jnp.tile(jnp.arange(n, dtype=jnp.int32), m)      # j coordinate of node u
    i_col, i_row = ii.reshape(N, 1), ii.reshape(1, N)
    j_col, j_row = jj.reshape(N, 1), jj.reshape(1, N)

    tile_r = _pick_row_tile(N)
    adj, cnt = _make_adjacency_call(N, tile_r)(
        thr, d_col, d_row, i_col, i_row, j_col, j_row, drop_mask)
    num_edges = cnt.sum()

    # convert_to_edge_index: nonzero indices in row-major (coalesced) order.
    # TODO(synk): torch returns a dynamically sized (2, nnz) tensor; JAX needs a static
    # bound, so we pad to the max possible edge count (<= 4 diagonal neighbours per node).
    max_edges = 4 * N
    rows, cols = jnp.nonzero(adj, size=max_edges, fill_value=-1)
    edge_index = jnp.stack([rows, cols]).astype(jnp.int32)
    return edge_index, num_edges, adj


if __name__ == "__main__":
    key = jax.random.PRNGKey(0)
    k_data, k_kernel = jax.random.split(key)
    d_coarse = jax.random.uniform(k_data, (1, 16, 16), dtype=jnp.float32)

    edge_index, num_edges, adj = extract_graph(d_coarse, 0.4, k_kernel)
    jax.block_until_ready((edge_index, num_edges, adj))

    m, n = 8, 8
    N = m * n
    assert edge_index.shape == (2, 4 * N) and edge_index.dtype == jnp.int32
    assert adj.shape == (N, N) and adj.dtype == jnp.int8
    assert int(num_edges) == int(adj.astype(jnp.int32).sum())
    assert int((edge_index[0] >= 0).sum()) == int(num_edges)
    print("KERNEL_OK")
</pallas_src>

<mosaic_0001>
module attributes {stable_mosaic.version = 11 : i64} {
  func.func @kernel(%arg0: memref<8x8xf32, #tpu.memory_space<vmem>>, %arg1: memref<4x8x8xf32, #tpu.memory_space<vmem>>, %arg2: memref<8x8xf32, #tpu.memory_space<vmem>>, %arg3: memref<1x1xf32, #tpu.memory_space<vmem>>) attributes {dimension_semantics = [], scalar_prefetch = 0 : i64, scratch_operands = 0 : i64, tpu.core_type = #tpu.core_type<tc>} {
    %c0 = arith.constant 0 : index
    %c0_0 = arith.constant 0 : index
    %c0_1 = arith.constant 0 : index
    %0 = vector.load %arg1[%c0, %c0_0, %c0_1] : memref<4x8x8xf32, #tpu.memory_space<vmem>>, vector<4x8x8xf32>
    %cst = arith.constant dense<0xFF800000> : vector<8x8xf32>
    %1 = vector.multi_reduction <maximumf>, %0, %cst [0] : vector<4x8x8xf32> to vector<8x8xf32>
    %2 = vector.shape_cast %1 : vector<8x8xf32> to vector<1x8x8xf32>
    %cst_2 = arith.constant dense<0xFF800000> : vector<1xf32>
    %3 = vector.multi_reduction <maximumf>, %2, %cst_2 [1, 2] : vector<1x8x8xf32> to vector<1xf32>
    %4 = vector.shape_cast %3 : vector<1xf32> to vector<1x1x1xf32>
    %5 = vector.extract %4[0, 0, 0] : f32 from vector<1x1x1xf32>
    %6 = vector.broadcast %5 : f32 to vector<1x1xf32>
    %7 = vector.shape_cast %1 : vector<8x8xf32> to vector<1x8x8xf32>
    %cst_3 = arith.constant dense<0x7F800000> : vector<1xf32>
    %8 = vector.multi_reduction <minimumf>, %7, %cst_3 [1, 2] : vector<1x8x8xf32> to vector<1xf32>
    %9 = vector.shape_cast %8 : vector<1xf32> to vector<1x1x1xf32>
    %10 = vector.extract %9[0, 0, 0] : f32 from vector<1x1x1xf32>
    %11 = vector.broadcast %10 : f32 to vector<1x1xf32>
    %12 = arith.subf %6, %11 : vector<1x1xf32>
    %cst_4 = arith.constant 1.250000e-01 : f32
    %13 = vector.broadcast %cst_4 : f32 to vector<1x1xf32>
    %14 = arith.mulf %12, %13 : vector<1x1xf32>
    %c0_5 = arith.constant 0 : index
    %c0_6 = arith.constant 0 : index
    %15 = vector.load %arg3[%c0_5, %c0_6] : memref<1x1xf32, #tpu.memory_space<vmem>>, vector<1x1xf32>
    tpu.vector_store %arg3[%c0_5, %c0_6], %14 {strides = array<i32>} : memref<1x1xf32, #tpu.memory_space<vmem>>, vector<1x1xf32>,
    %c0_7 = arith.constant 0 : index
    %c0_8 = arith.constant 0 : index
    %16 = vector.load %arg0[%c0_7, %c0_8] : memref<8x8xf32, #tpu.memory_space<vmem>>, vector<8x8xf32>
    %17 = arith.addf %1, %16 : vector<8x8xf32>
    %c0_9 = arith.constant 0 : index
    %c0_10 = arith.constant 0 : index
    %18 = vector.load %arg2[%c0_9, %c0_10] : memref<8x8xf32, #tpu.memory_space<vmem>>, vector<8x8xf32>
    tpu.vector_store %arg2[%c0_9, %c0_10], %17 {strides = array<i32>} : memref<8x8xf32, #tpu.memory_space<vmem>>, vector<8x8xf32>,
    return
  }
}

</mosaic_0001>

<llo_original>
// kernel: tpu_custom_call.1
$region0: #{tpu_custom_call.1}
  #allocation0 [shape = 'u32[]', space=smem, size = 0x4, offset = 0x4, fixed_abs, tag = 'smem constant byte address 0x4 - core index']
  #allocation1 [shape = 'u32[144,128]{1,0:T(1,128)}', space=vmem, size = 0x12000, scoped, tag = 'internal scratch']
  %s0 = inlined_call_operand.hbm [shape: f32[8,8], index: 0, kind: input, shape index: {}]
  %s1 = inlined_call_operand.hbm [shape: f32[4,8,8], index: 1, kind: input, shape index: {}]
  %s2 = inlined_call_operand.hbm [shape: f32[8,8], index: 2, kind: output, shape index: {0}]
  %s3 = inlined_call_operand.hbm [shape: f32[1,1], index: 3, kind: output, shape index: {1}]
  %4 = xla_tuple %s2, %s3
  %s5 = sld [smem:[#allocation0]]
  $region34: #{tpu_custom_call.1} parent=0
    _
  %s7 = ssub.s32 1, %s5
  %s8 = scalar_select 0, %s7, %s5
  $region1: #{tpu_custom_call.1} parent=0
    #allocation2 [shape = 'u8[4096]{0}', space=vmem, size = 0x1000, scoped, tag = 'input window, operand 0, single buffered']
    #allocation3 [shape = 's32[1]{0}', space=sflag, size = 0x4, scoped, tag = 'scoped memory for tpu_custom_call.1']
    #allocation4 [shape = 's32[1]{0}', space=sflag, size = 0x4, scoped, tag = 'scoped memory for tpu_custom_call.1']
    #allocation5 [shape = 'u8[16384]{0}', space=vmem, size = 0x4000, scoped, tag = 'input window, operand 1, single buffered']
    #allocation6 [shape = 's32[1]{0}', space=sflag, size = 0x4, scoped, tag = 'scoped memory for tpu_custom_call.1']
    #allocation7 [shape = 'u8[4096]{0}', space=vmem, size = 0x1000, scoped, tag = 'output window, operand 0, single buffered']
    #allocation8 [shape = 'u8[512]{0}', space=vmem, size = 0x400, scoped, tag = 'output window, operand 1, single buffered']
    #allocation9 [shape = 's32[1]{0}', space=sflag, size = 0x4, scoped, tag = 'scoped memory for tpu_custom_call.1']
    %9 = vsyncpa [#allocation3], 0
    %10 = vsyncpa [#allocation6], 0
    %11 = vsyncpa [#allocation4], 0
    %12 = vsyncpa [#allocation9], 0
    // Predicated region
    $region2: #{tpu_custom_call.1} parent=1 // pred_check
      _
    $region3: #{tpu_custom_call.1} parent=1 // pred_check_branch
      %14 = sbr.rel (0) target = $region5
    $region4: #{tpu_custom_call.1} parent=1 // pred_region
      %s16 = ssub.s32 128, 128
      %17 = vsyncadd [#allocation3], %s16
      %s19 = sshll.u32 [#allocation2], 4
      %s20 = int_to_ptr.vmem [resolvable:$true] %s19
      %22 = dma.hbm_to_vmem [thread:$0]  %s0, 128, %s20, [#allocation3]
    $region5: #{tpu_custom_call.1} parent=1 // pred_fallthru
      _
    // Predicated region
    $region6: #{tpu_custom_call.1} parent=1 // pred_check
      _
    $region7: #{tpu_custom_call.1} parent=1 // pred_check_branch
      %24 = sbr.rel (0) target = $region9
    $region8: #{tpu_custom_call.1} parent=1 // pred_region
      %s26 = ssub.s32 512, 512
      %27 = vsyncadd [#allocation6], %s26
      %s28 = sshll.u32 [#allocation5], 4
      %s29 = int_to_ptr.vmem [resolvable:$true] %s28
      %34 = dma.hbm_to_vmem [thread:$0]  %s1, 512, %s29, [#allocation6], 128, 128, 8
    $region9: #{tpu_custom_call.1} parent=1 // pred_fallthru
      _
    // Predicated region
    $region10: #{tpu_custom_call.1} parent=1 // pred_check
      _
    $region11: #{tpu_custom_call.1} parent=1 // pred_check_branch
      %36 = sbr.rel (0) target = $region13
    $region12: #{tpu_custom_call.1} parent=1 // pred_region
      %37 = dma.done [#allocation3], 128
    $region13: #{tpu_custom_call.1} parent=1 // pred_fallthru
      _
    // Predicated region
    $region14: #{tpu_custom_call.1} parent=1 // pred_check
      _
    $region15: #{tpu_custom_call.1} parent=1 // pred_check_branch
      %39 = sbr.rel (0) target = $region17
    $region16: #{tpu_custom_call.1} parent=1 // pred_region
      %40 = dma.done [#allocation6], 512
    $region17: #{tpu_custom_call.1} parent=1 // pred_fallthru
      _
    %v41 = vld [vmem:[#allocation5] sm:$0xff]
    %v42 = vld [vmem:[#allocation5 + $0x8] sm:$0xff]
    %v43 = vld [vmem:[#allocation5 + $0x10] sm:$0xff]
    %v44 = vld [vmem:[#allocation5 + $0x18] sm:$0xff]
    %vm45 = vcmask 64512
    %v46 = vsel %vm45, %v41, -inf
    %v47 = vsel %vm45, %v42, -inf
    %v48 = vsel %vm45, %v43, -inf
    %v49 = vsel %vm45, %v44, -inf
    %v50 = vmax.f32 %v46, %v47
    %v51 = vmax.f32 %v48, %v49
    %v52 = vmax.f32 %v50, %v51
    %v53 = vsel %vm45, %v52, -inf
    %54 = vmax.xlane.f32.xlu0 %v53
    %v55 = vpop.xlane.xlu0 %54
    %v56 = vrot.slane %v55, 4
    %v57 = vmax.f32 %v55, %v56
    %v58 = vrot.slane %v57, 2
    %v59 = vmax.f32 %v57, %v58
    %v60 = vrot.slane %v59, 1
    %v61 = vmax.f32 %v59, %v60
    %s62 = vtos %v61
    %v63 = vstv %s62
    %v64 = vsel %vm45, %v52, inf
    %65 = vmin.xlane.f32.xlu0 %v64
    %v66 = vpop.xlane.xlu0 %65
    %v67 = vrot.slane %v66, 4
    %v68 = vmin.f32 %v66, %v67
    %v69 = vrot.slane %v68, 2
    %v70 = vmin.f32 %v68, %v69
    %v71 = vrot.slane %v70, 1
    %v72 = vmin.f32 %v70, %v71
    %s73 = vtos %v72
    %v74 = vstv %s73
    %v75 = vsub.f32 %v63, %v74
    %v76 = vmul.f32 %v75, 0.125
    %vm77 = vcmask 0
    %78 = vst.msk [vmem:[#allocation8] sm:$0x1] %vm77, %v76
    %v79 = vld [vmem:[#allocation2] sm:$0xff]
    %v80 = vadd.f32 %v52, %v79
    %81 = vst.msk [vmem:[#allocation7] sm:$0xff] %vm45, %v80
    // Predicated region
    $region18: #{tpu_custom_call.1} parent=1 // pred_check
      _
    $region19: #{tpu_custom_call.1} parent=1 // pred_check_branch
      %83 = sbr.rel (0) target = $region21
    $region20: #{tpu_custom_call.1} parent=1 // pred_region
      %s85 = ssub.s32 128, 128
      %86 = vsyncadd [#allocation4], %s85
      %s88 = sshll.u32 [#allocation7], 4
      %s89 = int_to_ptr.vmem [resolvable:$true] %s88
      %91 = dma.vmem_to_hbm [thread:$0]  %s89, 128, %s2, [#allocation4]
    $region21: #{tpu_custom_call.1} parent=1 // pred_fallthru
      _
    // Predicated region
    $region22: #{tpu_custom_call.1} parent=1 // pred_check
      _
    $region23: #{tpu_custom_call.1} parent=1 // pred_check_branch
      %93 = sbr.rel (0) target = $region25
    $region24: #{tpu_custom_call.1} parent=1 // pred_region
      %s95 = ssub.s32 16, 16
      %96 = vsyncadd [#allocation9], %s95
      %s98 = sshll.u32 [#allocation8], 4
      %s99 = int_to_ptr.vmem [resolvable:$true] %s98
      %101 = dma.vmem_to_hbm [thread:$0]  %s99, 16, %s3, [#allocation9]
    $region25: #{tpu_custom_call.1} parent=1 // pred_fallthru
      _
    // Predicated region
    $region26: #{tpu_custom_call.1} parent=1 // pred_check
      _
    $region27: #{tpu_custom_call.1} parent=1 // pred_check_branch
      %103 = sbr.rel (0) target = $region29
    $region28: #{tpu_custom_call.1} parent=1 // pred_region
      %104 = dma.done [#allocation4], 128
    $region29: #{tpu_custom_call.1} parent=1 // pred_fallthru
      _
    // Predicated region
    $region30: #{tpu_custom_call.1} parent=1 // pred_check
      _
    $region31: #{tpu_custom_call.1} parent=1 // pred_check_branch
      %106 = sbr.rel (0) target = $region33
    $region32: #{tpu_custom_call.1} parent=1 // pred_region
      %107 = dma.done [#allocation9], 16
    $region33: #{tpu_custom_call.1} parent=1 // pred_fallthru
      _
    %108 = vsyncpa [#allocation3], 1
    %109 = vsyncpa [#allocation6], 1
    %110 = vsyncpa [#allocation4], 1
    %111 = vsyncpa [#allocation9], 1

</llo_original>
